<compile_context>
chip_gen: v7x
topology: tpu7x:2x2x1
jax: 0.10.0
libtpu: 0.0.40
codegen_flags: <defaults>
</compile_context>

<pallas_src>
import functools

import jax
import jax.numpy as jnp
from jax import lax
from jax.experimental import pallas as pl
from jax.experimental.pallas import tpu as pltpu


def _sepconv_kernel(xc_ref, xu_ref, xd_ref, wdw_ref, wpw_ref, bpw_ref, out_ref,
                    *, W, n_tiles, halo_row):
    # xc_ref : (1, C, L)       tile rows, flattened h*W + w (lane-dense)
    # xu_ref : (1, C, hb, W)   8-row chunk holding the image row just above the tile
    # xd_ref : (1, C, hb, W)   8-row chunk holding the image row just below the tile
    # wdw_ref: (C, 9)          depthwise weights, tap k = kh*3 + kw
    # wpw_ref: (Cout, C)       pointwise weights
    # bpw_ref: (Cout, 1)       pointwise bias
    # out_ref: (1, Cout, L)
    t = pl.program_id(1)
    C = xc_ref.shape[1]
    L = xc_ref.shape[2]
    f32 = jnp.float32
    # bf16 depthwise path on v6e/v7x style inputs; f32 otherwise (v5e / f32 inputs).
    cd = jnp.bfloat16 if xc_ref.dtype == jnp.bfloat16 else jnp.float32

    xc = xc_ref[0].astype(cd)                          # (C, L)
    xu = xu_ref[0, :, halo_row, :].astype(cd)          # (C, W) image row above tile
    xd = xd_ref[0, :, 0, :].astype(cd)                 # (C, W) image row below tile
    # Halo rows that fall outside the image are the zero padding.
    xu = jnp.where(t > 0, xu, 0.0).astype(cd)
    xd = jnp.where(t < n_tiles - 1, xd, 0.0).astype(cd)

    w = wdw_ref[...].astype(cd)                        # (C, 9), hoisted once
    lane = lax.broadcasted_iota(jnp.int32, (1, L), 1)  # flat index within the tile
    col = lane % W                                     # image column

    # Row-above / row-below slabs via XLU rolls (shifts are non-negative rotations).
    # Tile-boundary rows are zeroed here and patched with (C, W) corrections below.
    up = jnp.where(lane >= W, pltpu.roll(xc, shift=W, axis=1), 0.0)
    down = jnp.where(lane < L - W, pltpu.roll(xc, shift=L - W, axis=1), 0.0)

    # Fold the three kh taps per kw column; per-channel scales broadcast on lanes.
    left = w[:, 0:1] * up + w[:, 3:4] * xc + w[:, 6:7] * down     # kw = 0
    cen = w[:, 1:2] * up + w[:, 4:5] * xc + w[:, 7:8] * down      # kw = 1
    right = w[:, 2:3] * up + w[:, 5:6] * xc + w[:, 8:9] * down    # kw = 2

    # kw = 0 / 2 are +-1 lane rotations (XLU) with image-column masks (zero pad).
    acc = cen
    acc = acc + jnp.where(col != 0, pltpu.roll(left, shift=1, axis=1), 0.0)
    acc = acc + jnp.where(col != W - 1, pltpu.roll(right, shift=L - 1, axis=1), 0.0)

    # Pointwise 1x1: C, Cout are tiny -> VPU FMAs in the same lane-dense layout,
    # accumulated in f32.
    acc32 = acc.astype(f32)
    wpw = wpw_ref[...].astype(f32)                     # (Cout, C)
    y = wpw[:, 0:1] * acc32[0:1, :]                    # (Cout,1)*(1,L) -> (Cout, L)
    for c in range(1, C):
        y = y + wpw[:, c:c + 1] * acc32[c:c + 1, :]
    y = y + bpw_ref[...].astype(f32)                   # (Cout, 1) bias
    out_ref[0] = y.astype(out_ref.dtype)

    # --- Halo corrections (first / last row of the tile), all on (C|Cout, W). -----
    wdw32 = wdw_ref[...].astype(f32)
    xu32 = xu.astype(f32)
    xd32 = xd.astype(f32)

    def shift_row(r, d):
        # r: (C, W).  d=-1 -> r[w-1] (zero at w=0); d=+1 -> r[w+1] (zero at w=W-1).
        z = jnp.zeros((C, 1), r.dtype)
        if d < 0:
            return jnp.concatenate([z, r[:, :W - 1]], axis=1)
        return jnp.concatenate([r[:, 1:], z], axis=1)

    dacc_top = (wdw32[:, 0:1] * shift_row(xu32, -1) + wdw32[:, 1:2] * xu32
                + wdw32[:, 2:3] * shift_row(xu32, +1))          # kh = 0 taps
    dacc_bot = (wdw32[:, 6:7] * shift_row(xd32, -1) + wdw32[:, 7:8] * xd32
                + wdw32[:, 8:9] * shift_row(xd32, +1))          # kh = 2 taps

    dy_top = wpw[:, 0:1] * dacc_top[0:1, :]
    dy_bot = wpw[:, 0:1] * dacc_bot[0:1, :]
    for c in range(1, C):
        dy_top = dy_top + wpw[:, c:c + 1] * dacc_top[c:c + 1, :]
        dy_bot = dy_bot + wpw[:, c:c + 1] * dacc_bot[c:c + 1, :]

    top = out_ref[0, :, 0:W].astype(f32) + dy_top               # W-lane masked RMW
    out_ref[0, :, 0:W] = top.astype(out_ref.dtype)
    bot = out_ref[0, :, L - W:L].astype(f32) + dy_bot
    out_ref[0, :, L - W:L] = bot.astype(out_ref.dtype)


def _vmem_capacity_bytes():
    try:
        info = pltpu.get_tpu_info()
        cap = getattr(info, "vmem_capacity_bytes", None)
        if cap:
            return int(cap)
    except Exception:
        pass
    return 64 * 1024 * 1024   # conservative fallback: v7x has the smallest VMEM


def _pick_tile_rows(N, C, Cout, H, W, in_item, out_item, budget, temp_cap):
    """Rows per grid tile: multiple of 8 dividing H with tile*W % 128 == 0 (or the
    full image), sized against the real per-step pipeline footprint."""
    def footprint(th):
        L = th * W
        io = 2 * (C * in_item + Cout * out_item) * L       # double-buffered in/out
        halos = 2 * 2 * C * 8 * W * in_item                # two halo operands, 2x buf
        wts = 2 * (C * 9 + Cout * C + Cout) * 4
        temps = (7 * C + Cout) * L * 4                     # in-kernel live f32 slabs
        return io + halos + wts + temps, temps

    cands = [th for th in range(8, H + 1, 8) if H % th == 0 and (th * W) % 128 == 0]
    if H not in cands:
        cands.append(H)            # full-image block (== full dims) is always legal
    valid = []
    for th in cands:
        tot, temps = footprint(th)
        if tot <= budget and temps <= temp_cap:
            valid.append(th)
    if not valid:
        # TODO(synk): for pathological (C, Cout, W) even the smallest legal tile
        # overshoots; take it anyway and rely on the raised vmem_limit_bytes.
        valid = [min(cands)]
    # Occupancy: keep >= ~4 grid steps (>= 2 per v7x TensorCore) when possible.
    occ = [th for th in valid if (H // th) * N >= 4]
    return max(occ) if occ else max(valid)


def separable_conv2d(x_nchw, w_dw_torch, w_pw_torch, b_pw):
    """x_nchw: (N, C, H, W); torch-layout weights:
       w_dw_torch (C,1,3,3), w_pw_torch (Cout,C,1,1), b_pw (Cout,)."""
    N, C, H, W = x_nchw.shape
    Cout = w_pw_torch.shape[0]
    in_item = x_nchw.dtype.itemsize
    out_item = in_item

    # Generation-aware VMEM budgeting: ~<=32 MiB pipeline footprint on v7x (64 MiB
    # VMEM), up to ~48 MiB on v5e/v6e (128 MiB VMEM).
    cap = _vmem_capacity_bytes()
    budget = min(cap // 2, 48 * 1024 * 1024)
    temp_cap = 4 * 1024 * 1024     # cap on in-kernel temporaries until strip-mined
    vmem_limit = int(min(cap, max(budget + 16 * 1024 * 1024, 32 * 1024 * 1024)))

    th = _pick_tile_rows(N, C, Cout, H, W, in_item, out_item, budget, temp_cap)
    n_tiles = H // th
    L = th * W
    hb = 8 if n_tiles > 1 else min(8, H)               # halo block rows
    rows_blk = th // 8 if n_tiles > 1 else 0

    # Free relayouts only (no pad, no transpose): flattened + 4D views of x.
    x_flat = x_nchw.reshape(N, C, H * W)
    w_dw = w_dw_torch.reshape(C, 9)                    # tap k = kh*3 + kw
    w_pw = w_pw_torch.reshape(Cout, C)
    b = b_pw.reshape(Cout, 1)

    if n_tiles > 1:
        up_map = lambda n, t: (n, 0, jnp.maximum(t * rows_blk - 1, 0), 0)
        dn_map = lambda n, t: (n, 0, jnp.minimum((t + 1) * rows_blk, H // 8 - 1), 0)
    else:
        up_map = lambda n, t: (n, 0, 0, 0)
        dn_map = lambda n, t: (n, 0, 0, 0)

    kernel = functools.partial(_sepconv_kernel, W=W, n_tiles=n_tiles,
                               halo_row=hb - 1)

    out = pl.pallas_call(
        kernel,
        out_shape=jax.ShapeDtypeStruct((N, Cout, H * W), x_nchw.dtype),
        grid_spec=pltpu.PrefetchScalarGridSpec(
            num_scalar_prefetch=0,
            grid=(N, n_tiles),
            in_specs=[
                pl.BlockSpec((1, C, L), lambda n, t: (n, 0, t)),        # tile rows
                pl.BlockSpec((1, C, hb, W), up_map),                    # halo above
                pl.BlockSpec((1, C, hb, W), dn_map),                    # halo below
                pl.BlockSpec((C, 9), lambda n, t: (0, 0)),
                pl.BlockSpec((Cout, C), lambda n, t: (0, 0)),
                pl.BlockSpec((Cout, 1), lambda n, t: (0, 0)),
            ],
            out_specs=pl.BlockSpec((1, Cout, L), lambda n, t: (n, 0, t)),
        ),
        compiler_params=pltpu.CompilerParams(
            dimension_semantics=("parallel", "parallel"),
            vmem_limit_bytes=vmem_limit,
        ),
    )(x_flat, x_nchw, x_nchw, w_dw, w_pw, b)

    return out.reshape(N, Cout, H, W)                  # free reshape, already NCHW


def _reference(x_nchw, w_dw_torch, w_pw_torch, b_pw):
    """Plain-JAX reference using lax conv (NCHW / OIHW), mirrors PyTorch."""
    C = x_nchw.shape[1]
    dn = ("NCHW", "OIHW", "NCHW")
    y = lax.conv_general_dilated(x_nchw, w_dw_torch, (1, 1), ((1, 1), (1, 1)),
                                 dimension_numbers=dn, feature_group_count=C)
    y = lax.conv_general_dilated(y, w_pw_torch, (1, 1), ((0, 0), (0, 0)),
                                 dimension_numbers=dn)
    return y + b_pw[None, :, None, None]


def _run_case(key, N, C, H, W, Cout):
    kx, k1, k2, k3 = jax.random.split(key, 4)
    x = jax.random.normal(kx, (N, C, H, W), jnp.float32)
    # Deterministic synthetic params (PyTorch-like fan-in scaling, not a checkpoint).
    w_dw = jax.random.normal(k1, (C, 1, 3, 3), jnp.float32) * (1.0 / 3.0)
    w_pw = jax.random.normal(k2, (Cout, C, 1, 1), jnp.float32) * (1.0 / (C ** 0.5))
    b_pw = jax.random.normal(k3, (Cout,), jnp.float32) * 0.1

    out = jax.block_until_ready(separable_conv2d(x, w_dw, w_pw, b_pw))
    ref = jax.block_until_ready(_reference(x, w_dw, w_pw, b_pw))
    assert out.shape == (N, Cout, H, W)
    err = float(jnp.max(jnp.abs(out - ref)))
    assert jnp.allclose(out, ref, atol=1e-4, rtol=1e-4), err


if __name__ == "__main__":
    key = jax.random.PRNGKey(0)
    k_a, k_b = jax.random.split(key)

    # Multi-tile path (grid = (2, 2)) and single-tile path (halos fully masked).
    _run_case(k_a, N=2, C=4, H=16, W=16, Cout=8)
    _run_case(k_b, N=1, C=3, H=8, W=16, Cout=5)

    print("KERNEL_OK")
</pallas_src>

<mosaic_0001>
module attributes {stable_mosaic.version = 11 : i64} {
  func.func @_sepconv_kernel(%arg0: i32, %arg1: i32, %arg2: memref<1x4x128xf32, #tpu.memory_space<vmem>>, %arg3: memref<1x4x8x16xf32, #tpu.memory_space<vmem>>, %arg4: memref<1x4x8x16xf32, #tpu.memory_space<vmem>>, %arg5: memref<4x9xf32, #tpu.memory_space<vmem>>, %arg6: memref<8x4xf32, #tpu.memory_space<vmem>>, %arg7: memref<8x1xf32, #tpu.memory_space<vmem>>, %arg8: memref<1x8x128xf32, #tpu.memory_space<vmem>>) attributes {dimension_semantics = [#tpu.dimension_semantics<parallel>, #tpu.dimension_semantics<parallel>], iteration_bounds = array<i64: 2, 2>, scalar_prefetch = 0 : i64, scratch_operands = 0 : i64, tpu.core_type = #tpu.core_type<tc>, window_params = [{transform_indices = @transform_0, window_bounds = array<i64: 1, 4, 128>}, {transform_indices = @transform_1, window_bounds = array<i64: 1, 4, 8, 16>}, {transform_indices = @transform_2, window_bounds = array<i64: 1, 4, 8, 16>}, {pipeline_mode = #tpu.pipeline_mode<synchronous>, transform_indices = @transform_3, window_bounds = array<i64: 4, 9>}, {pipeline_mode = #tpu.pipeline_mode<synchronous>, transform_indices = @transform_4, window_bounds = array<i64: 8, 4>}, {pipeline_mode = #tpu.pipeline_mode<synchronous>, transform_indices = @transform_5, window_bounds = array<i64: 8, 1>}, {transform_indices = @transform_6, window_bounds = array<i64: 1, 8, 128>}]} {
    %c0 = arith.constant 0 : index
    %c0_0 = arith.constant 0 : index
    %c0_1 = arith.constant 0 : index
    %0 = vector.load %arg2[%c0, %c0_0, %c0_1] : memref<1x4x128xf32, #tpu.memory_space<vmem>>, vector<1x4x128xf32>
    %1 = vector.shape_cast %0 : vector<1x4x128xf32> to vector<4x128xf32>
    %c0_2 = arith.constant 0 : index
    %c0_3 = arith.constant 0 : index
    %c7 = arith.constant 7 : index
    %c0_4 = arith.constant 0 : index
    %2 = vector.load %arg3[%c0_2, %c0_3, %c7, %c0_4] : memref<1x4x8x16xf32, #tpu.memory_space<vmem>>, vector<1x4x1x16xf32>
    %3 = vector.shape_cast %2 : vector<1x4x1x16xf32> to vector<4x16xf32>
    %c0_5 = arith.constant 0 : index
    %c0_6 = arith.constant 0 : index
    %c0_7 = arith.constant 0 : index
    %c0_8 = arith.constant 0 : index
    %4 = vector.load %arg4[%c0_5, %c0_6, %c0_7, %c0_8] : memref<1x4x8x16xf32, #tpu.memory_space<vmem>>, vector<1x4x1x16xf32>
    %5 = vector.shape_cast %4 : vector<1x4x1x16xf32> to vector<4x16xf32>
    %c0_i32 = arith.constant 0 : i32
    %6 = arith.cmpi sgt, %arg1, %c0_i32 : i32
    %cst = arith.constant 0.000000e+00 : f32
    %7 = vector.broadcast %cst : f32 to vector<4x16xf32>
    %8 = arith.select %6, %3, %7 : vector<4x16xf32>
    %c1_i32 = arith.constant 1 : i32
    %9 = arith.cmpi slt, %arg1, %c1_i32 : i32
    %cst_9 = arith.constant 0.000000e+00 : f32
    %10 = vector.broadcast %cst_9 : f32 to vector<4x16xf32>
    %11 = arith.select %9, %5, %10 : vector<4x16xf32>
    %c0_10 = arith.constant 0 : index
    %c0_11 = arith.constant 0 : index
    %12 = vector.load %arg5[%c0_10, %c0_11] : memref<4x9xf32, #tpu.memory_space<vmem>>, vector<4x9xf32>
    %13 = tpu.iota {dimensions = array<i32: 1>} : vector<1x128xi32>
    %c16_i32 = arith.constant 16 : i32
    %c0_i32_12 = arith.constant 0 : i32
    %14 = arith.cmpi eq, %c16_i32, %c0_i32_12 : i32
    %c1_i32_13 = arith.constant 1 : i32
    %15 = arith.select %14, %c1_i32_13, %c16_i32 : i32
    %16 = vector.broadcast %15 : i32 to vector<1x128xi32>
    %17 = arith.remsi %13, %16 : vector<1x128xi32>
    %c0_i32_14 = arith.constant 0 : i32
    %18 = vector.broadcast %c0_i32_14 : i32 to vector<1x128xi32>
    %19 = arith.cmpi ne, %17, %18 : vector<1x128xi32>
    %c0_i32_15 = arith.constant 0 : i32
    %20 = vector.broadcast %c0_i32_15 : i32 to vector<1x128xi32>
    %21 = arith.cmpi slt, %17, %20 : vector<1x128xi32>
    %c0_i32_16 = arith.constant 0 : i32
    %22 = arith.cmpi slt, %15, %c0_i32_16 : i32
    %23 = vector.broadcast %22 : i1 to vector<1x128xi1>
    %24 = vector.broadcast %23 : vector<1x128xi1> to vector<1x128xi1>
    %25 = arith.xori %21, %24 : vector<1x128xi1>
    %26 = arith.andi %25, %19 : vector<1x128xi1>
    %27 = vector.broadcast %15 : i32 to vector<1x128xi32>
    %28 = arith.addi %17, %27 : vector<1x128xi32>
    %29 = arith.select %26, %28, %17 : vector<1x128xi1>, vector<1x128xi32>
    %c16_i32_17 = arith.constant 16 : i32
    %30 = vector.broadcast %c16_i32_17 : i32 to vector<1x128xi32>
    %31 = arith.cmpi sge, %13, %30 : vector<1x128xi32>
    %c16_i32_18 = arith.constant 16 : i32
    %32 = tpu.dynamic_rotate %1 by %c16_i32_18 dim 1 : vector<4x128xf32>, i32 -> vector<4x128xf32>
    %cst_19 = arith.constant 0.000000e+00 : f32
    %33 = vector.shape_cast %31 : vector<1x128xi1> to vector<1x128xi1>
    %34 = vector.broadcast %33 : vector<1x128xi1> to vector<4x128xi1>
    %35 = vector.broadcast %cst_19 : f32 to vector<4x128xf32>
    %36 = arith.select %34, %32, %35 : vector<4x128xi1>, vector<4x128xf32>
    %c112_i32 = arith.constant 112 : i32
    %37 = vector.broadcast %c112_i32 : i32 to vector<1x128xi32>
    %38 = arith.cmpi slt, %13, %37 : vector<1x128xi32>
    %c112_i32_20 = arith.constant 112 : i32
    %39 = tpu.dynamic_rotate %1 by %c112_i32_20 dim 1 : vector<4x128xf32>, i32 -> vector<4x128xf32>
    %cst_21 = arith.constant 0.000000e+00 : f32
    %40 = vector.shape_cast %38 : vector<1x128xi1> to vector<1x128xi1>
    %41 = vector.broadcast %40 : vector<1x128xi1> to vector<4x128xi1>
    %42 = vector.broadcast %cst_21 : f32 to vector<4x128xf32>
    %43 = arith.select %41, %39, %42 : vector<4x128xi1>, vector<4x128xf32>
    %44 = vector.extract_strided_slice %12 {offsets = [0, 0], sizes = [4, 1], strides = [1, 1]} : vector<4x9xf32> to vector<4x1xf32>
    %45 = vector.broadcast %44 : vector<4x1xf32> to vector<4x128xf32>
    %46 = arith.mulf %45, %36 : vector<4x128xf32>
    %47 = vector.extract_strided_slice %12 {offsets = [0, 3], sizes = [4, 1], strides = [1, 1]} : vector<4x9xf32> to vector<4x1xf32>
    %48 = vector.broadcast %47 : vector<4x1xf32> to vector<4x128xf32>
    %49 = arith.mulf %48, %1 : vector<4x128xf32>
    %50 = arith.addf %46, %49 : vector<4x128xf32>
    %51 = vector.extract_strided_slice %12 {offsets = [0, 6], sizes = [4, 1], strides = [1, 1]} : vector<4x9xf32> to vector<4x1xf32>
    %52 = vector.broadcast %51 : vector<4x1xf32> to vector<4x128xf32>
    %53 = arith.mulf %52, %43 : vector<4x128xf32>
    %54 = arith.addf %50, %53 : vector<4x128xf32>
    %55 = vector.extract_strided_slice %12 {offsets = [0, 1], sizes = [4, 1], strides = [1, 1]} : vector<4x9xf32> to vector<4x1xf32>
    %56 = vector.broadcast %55 : vector<4x1xf32> to vector<4x128xf32>
    %57 = arith.mulf %56, %36 : vector<4x128xf32>
    %58 = vector.extract_strided_slice %12 {offsets = [0, 4], sizes = [4, 1], strides = [1, 1]} : vector<4x9xf32> to vector<4x1xf32>
    %59 = vector.broadcast %58 : vector<4x1xf32> to vector<4x128xf32>
    %60 = arith.mulf %59, %1 : vector<4x128xf32>
    %61 = arith.addf %57, %60 : vector<4x128xf32>
    %62 = vector.extract_strided_slice %12 {offsets = [0, 7], sizes = [4, 1], strides = [1, 1]} : vector<4x9xf32> to vector<4x1xf32>
    %63 = vector.broadcast %62 : vector<4x1xf32> to vector<4x128xf32>
    %64 = arith.mulf %63, %43 : vector<4x128xf32>
    %65 = arith.addf %61, %64 : vector<4x128xf32>
    %66 = vector.extract_strided_slice %12 {offsets = [0, 2], sizes = [4, 1], strides = [1, 1]} : vector<4x9xf32> to vector<4x1xf32>
    %67 = vector.broadcast %66 : vector<4x1xf32> to vector<4x128xf32>
    %68 = arith.mulf %67, %36 : vector<4x128xf32>
    %69 = vector.extract_strided_slice %12 {offsets = [0, 5], sizes = [4, 1], strides = [1, 1]} : vector<4x9xf32> to vector<4x1xf32>
    %70 = vector.broadcast %69 : vector<4x1xf32> to vector<4x128xf32>
    %71 = arith.mulf %70, %1 : vector<4x128xf32>
    %72 = arith.addf %68, %71 : vector<4x128xf32>
    %73 = vector.extract_strided_slice %12 {offsets = [0, 8], sizes = [4, 1], strides = [1, 1]} : vector<4x9xf32> to vector<4x1xf32>
    %74 = vector.broadcast %73 : vector<4x1xf32> to vector<4x128xf32>
    %75 = arith.mulf %74, %43 : vector<4x128xf32>
    %76 = arith.addf %72, %75 : vector<4x128xf32>
    %c0_i32_22 = arith.constant 0 : i32
    %77 = vector.broadcast %c0_i32_22 : i32 to vector<1x128xi32>
    %78 = arith.cmpi ne, %29, %77 : vector<1x128xi32>
    %c1_i32_23 = arith.constant 1 : i32
    %79 = tpu.dynamic_rotate %54 by %c1_i32_23 dim 1 : vector<4x128xf32>, i32 -> vector<4x128xf32>
    %cst_24 = arith.constant 0.000000e+00 : f32
    %80 = vector.shape_cast %78 : vector<1x128xi1> to vector<1x128xi1>
    %81 = vector.broadcast %80 : vector<1x128xi1> to vector<4x128xi1>
    %82 = vector.broadcast %cst_24 : f32 to vector<4x128xf32>
    %83 = arith.select %81, %79, %82 : vector<4x128xi1>, vector<4x128xf32>
    %84 = arith.addf %65, %83 : vector<4x128xf32>
    %c15_i32 = arith.constant 15 : i32
    %85 = vector.broadcast %c15_i32 : i32 to vector<1x128xi32>
    %86 = arith.cmpi ne, %29, %85 : vector<1x128xi32>
    %c127_i32 = arith.constant 127 : i32
    %87 = tpu.dynamic_rotate %76 by %c127_i32 dim 1 : vector<4x128xf32>, i32 -> vector<4x128xf32>
    %cst_25 = arith.constant 0.000000e+00 : f32
    %88 = vector.shape_cast %86 : vector<1x128xi1> to vector<1x128xi1>
    %89 = vector.broadcast %88 : vector<1x128xi1> to vector<4x128xi1>
    %90 = vector.broadcast %cst_25 : f32 to vector<4x128xf32>
    %91 = arith.select %89, %87, %90 : vector<4x128xi1>, vector<4x128xf32>
    %92 = arith.addf %84, %91 : vector<4x128xf32>
    %c0_26 = arith.constant 0 : index
    %c0_27 = arith.constant 0 : index
    %93 = vector.load %arg6[%c0_26, %c0_27] : memref<8x4xf32, #tpu.memory_space<vmem>>, vector<8x4xf32>
    %94 = vector.extract_strided_slice %93 {offsets = [0, 0], sizes = [8, 1], strides = [1, 1]} : vector<8x4xf32> to vector<8x1xf32>
    %95 = vector.extract_strided_slice %92 {offsets = [0, 0], sizes = [1, 128], strides = [1, 1]} : vector<4x128xf32> to vector<1x128xf32>
    %96 = vector.broadcast %94 : vector<8x1xf32> to vector<8x128xf32>
    %97 = vector.broadcast %95 : vector<1x128xf32> to vector<8x128xf32>
    %98 = arith.mulf %96, %97 : vector<8x128xf32>
    %99 = vector.extract_strided_slice %93 {offsets = [0, 1], sizes = [8, 1], strides = [1, 1]} : vector<8x4xf32> to vector<8x1xf32>
    %100 = vector.extract_strided_slice %92 {offsets = [1, 0], sizes = [1, 128], strides = [1, 1]} : vector<4x128xf32> to vector<1x128xf32>
    %101 = vector.broadcast %99 : vector<8x1xf32> to vector<8x128xf32>
    %102 = vector.broadcast %100 : vector<1x128xf32> to vector<8x128xf32>
    %103 = arith.mulf %101, %102 : vector<8x128xf32>
    %104 = arith.addf %98, %103 : vector<8x128xf32>
    %105 = vector.extract_strided_slice %93 {offsets = [0, 2], sizes = [8, 1], strides = [1, 1]} : vector<8x4xf32> to vector<8x1xf32>
    %106 = vector.extract_strided_slice %92 {offsets = [2, 0], sizes = [1, 128], strides = [1, 1]} : vector<4x128xf32> to vector<1x128xf32>
    %107 = vector.broadcast %105 : vector<8x1xf32> to vector<8x128xf32>
    %108 = vector.broadcast %106 : vector<1x128xf32> to vector<8x128xf32>
    %109 = arith.mulf %107, %108 : vector<8x128xf32>
    %110 = arith.addf %104, %109 : vector<8x128xf32>
    %111 = vector.extract_strided_slice %93 {offsets = [0, 3], sizes = [8, 1], strides = [1, 1]} : vector<8x4xf32> to vector<8x1xf32>
    %112 = vector.extract_strided_slice %92 {offsets = [3, 0], sizes = [1, 128], strides = [1, 1]} : vector<4x128xf32> to vector<1x128xf32>
    %113 = vector.broadcast %111 : vector<8x1xf32> to vector<8x128xf32>
    %114 = vector.broadcast %112 : vector<1x128xf32> to vector<8x128xf32>
    %115 = arith.mulf %113, %114 : vector<8x128xf32>
    %116 = arith.addf %110, %115 : vector<8x128xf32>
    %c0_28 = arith.constant 0 : index
    %c0_29 = arith.constant 0 : index
    %117 = vector.load %arg7[%c0_28, %c0_29] : memref<8x1xf32, #tpu.memory_space<vmem>>, vector<8x1xf32>
    %118 = vector.broadcast %117 : vector<8x1xf32> to vector<8x128xf32>
    %119 = arith.addf %116, %118 : vector<8x128xf32>
    %c0_30 = arith.constant 0 : index
    %c0_31 = arith.constant 0 : index
    %c0_32 = arith.constant 0 : index
    %120 = vector.load %arg8[%c0_30, %c0_31, %c0_32] : memref<1x8x128xf32, #tpu.memory_space<vmem>>, vector<1x8x128xf32>
    %121 = vector.shape_cast %120 : vector<1x8x128xf32> to vector<8x128xf32>
    %122 = vector.shape_cast %119 : vector<8x128xf32> to vector<1x8x128xf32>
    tpu.vector_store %arg8[%c0_30, %c0_31, %c0_32], %122 {strides = array<i32>} : memref<1x8x128xf32, #tpu.memory_space<vmem>>, vector<1x8x128xf32>,
    %c0_33 = arith.constant 0 : index
    %c0_34 = arith.constant 0 : index
    %123 = vector.load %arg5[%c0_33, %c0_34] : memref<4x9xf32, #tpu.memory_space<vmem>>, vector<4x9xf32>
    %124 = vector.extract_strided_slice %123 {offsets = [0, 0], sizes = [4, 1], strides = [1, 1]} : vector<4x9xf32> to vector<4x1xf32>
    %cst_35 = arith.constant 0.000000e+00 : f32
    %125 = vector.broadcast %cst_35 : f32 to vector<4x1xf32>
    %126 = vector.extract_strided_slice %8 {offsets = [0, 0], sizes = [4, 15], strides = [1, 1]} : vector<4x16xf32> to vector<4x15xf32>
    %127 = tpu.concatenate %125, %126 in 1 : vector<4x1xf32>, vector<4x15xf32> -> vector<4x16xf32>
    %128 = vector.broadcast %124 : vector<4x1xf32> to vector<4x16xf32>
    %129 = arith.mulf %128, %127 : vector<4x16xf32>
    %130 = vector.extract_strided_slice %123 {offsets = [0, 1], sizes = [4, 1], strides = [1, 1]} : vector<4x9xf32> to vector<4x1xf32>
    %131 = vector.broadcast %130 : vector<4x1xf32> to vector<4x16xf32>
    %132 = arith.mulf %131, %8 : vector<4x16xf32>
    %133 = arith.addf %129, %132 : vector<4x16xf32>
    %134 = vector.extract_strided_slice %123 {offsets = [0, 2], sizes = [4, 1], strides = [1, 1]} : vector<4x9xf32> to vector<4x1xf32>
    %cst_36 = arith.constant 0.000000e+00 : f32
    %135 = vector.broadcast %cst_36 : f32 to vector<4x1xf32>
    %136 = vector.extract_strided_slice %8 {offsets = [0, 1], sizes = [4, 15], strides = [1, 1]} : vector<4x16xf32> to vector<4x15xf32>
    %137 = tpu.concatenate %136, %135 in 1 : vector<4x15xf32>, vector<4x1xf32> -> vector<4x16xf32>
    %138 = vector.broadcast %134 : vector<4x1xf32> to vector<4x16xf32>
    %139 = arith.mulf %138, %137 : vector<4x16xf32>
    %140 = arith.addf %133, %139 : vector<4x16xf32>
    %141 = vector.extract_strided_slice %123 {offsets = [0, 6], sizes = [4, 1], strides = [1, 1]} : vector<4x9xf32> to vector<4x1xf32>
    %cst_37 = arith.constant 0.000000e+00 : f32
    %142 = vector.broadcast %cst_37 : f32 to vector<4x1xf32>
    %143 = vector.extract_strided_slice %11 {offsets = [0, 0], sizes = [4, 15], strides = [1, 1]} : vector<4x16xf32> to vector<4x15xf32>
    %144 = tpu.concatenate %142, %143 in 1 : vector<4x1xf32>, vector<4x15xf32> -> vector<4x16xf32>
    %145 = vector.broadcast %141 : vector<4x1xf32> to vector<4x16xf32>
    %146 = arith.mulf %145, %144 : vector<4x16xf32>
    %147 = vector.extract_strided_slice %123 {offsets = [0, 7], sizes = [4, 1], strides = [1, 1]} : vector<4x9xf32> to vector<4x1xf32>
    %148 = vector.broadcast %147 : vector<4x1xf32> to vector<4x16xf32>
    %149 = arith.mulf %148, %11 : vector<4x16xf32>
    %150 = arith.addf %146, %149 : vector<4x16xf32>
    %151 = vector.extract_strided_slice %123 {offsets = [0, 8], sizes = [4, 1], strides = [1, 1]} : vector<4x9xf32> to vector<4x1xf32>
    %cst_38 = arith.constant 0.000000e+00 : f32
    %152 = vector.broadcast %cst_38 : f32 to vector<4x1xf32>
    %153 = vector.extract_strided_slice %11 {offsets = [0, 1], sizes = [4, 15], strides = [1, 1]} : vector<4x16xf32> to vector<4x15xf32>
    %154 = tpu.concatenate %153, %152 in 1 : vector<4x15xf32>, vector<4x1xf32> -> vector<4x16xf32>
    %155 = vector.broadcast %151 : vector<4x1xf32> to vector<4x16xf32>
    %156 = arith.mulf %155, %154 : vector<4x16xf32>
    %157 = arith.addf %150, %156 : vector<4x16xf32>
    %158 = vector.extract_strided_slice %93 {offsets = [0, 0], sizes = [8, 1], strides = [1, 1]} : vector<8x4xf32> to vector<8x1xf32>
    %159 = vector.extract_strided_slice %140 {offsets = [0, 0], sizes = [1, 16], strides = [1, 1]} : vector<4x16xf32> to vector<1x16xf32>
    %160 = vector.broadcast %158 : vector<8x1xf32> to vector<8x16xf32>
    %161 = vector.broadcast %159 : vector<1x16xf32> to vector<8x16xf32>
    %162 = arith.mulf %160, %161 : vector<8x16xf32>
    %163 = vector.extract_strided_slice %93 {offsets = [0, 0], sizes = [8, 1], strides = [1, 1]} : vector<8x4xf32> to vector<8x1xf32>
    %164 = vector.extract_strided_slice %157 {offsets = [0, 0], sizes = [1, 16], strides = [1, 1]} : vector<4x16xf32> to vector<1x16xf32>
    %165 = vector.broadcast %163 : vector<8x1xf32> to vector<8x16xf32>
    %166 = vector.broadcast %164 : vector<1x16xf32> to vector<8x16xf32>
    %167 = arith.mulf %165, %166 : vector<8x16xf32>
    %168 = vector.extract_strided_slice %93 {offsets = [0, 1], sizes = [8, 1], strides = [1, 1]} : vector<8x4xf32> to vector<8x1xf32>
    %169 = vector.extract_strided_slice %140 {offsets = [1, 0], sizes = [1, 16], strides = [1, 1]} : vector<4x16xf32> to vector<1x16xf32>
    %170 = vector.broadcast %168 : vector<8x1xf32> to vector<8x16xf32>
    %171 = vector.broadcast %169 : vector<1x16xf32> to vector<8x16xf32>
    %172 = arith.mulf %170, %171 : vector<8x16xf32>
    %173 = arith.addf %162, %172 : vector<8x16xf32>
    %174 = vector.extract_strided_slice %93 {offsets = [0, 1], sizes = [8, 1], strides = [1, 1]} : vector<8x4xf32> to vector<8x1xf32>
    %175 = vector.extract_strided_slice %157 {offsets = [1, 0], sizes = [1, 16], strides = [1, 1]} : vector<4x16xf32> to vector<1x16xf32>
    %176 = vector.broadcast %174 : vector<8x1xf32> to vector<8x16xf32>
    %177 = vector.broadcast %175 : vector<1x16xf32> to vector<8x16xf32>
    %178 = arith.mulf %176, %177 : vector<8x16xf32>
    %179 = arith.addf %167, %178 : vector<8x16xf32>
    %180 = vector.extract_strided_slice %93 {offsets = [0, 2], sizes = [8, 1], strides = [1, 1]} : vector<8x4xf32> to vector<8x1xf32>
    %181 = vector.extract_strided_slice %140 {offsets = [2, 0], sizes = [1, 16], strides = [1, 1]} : vector<4x16xf32> to vector<1x16xf32>
    %182 = vector.broadcast %180 : vector<8x1xf32> to vector<8x16xf32>
    %183 = vector.broadcast %181 : vector<1x16xf32> to vector<8x16xf32>
    %184 = arith.mulf %182, %183 : vector<8x16xf32>
    %185 = arith.addf %173, %184 : vector<8x16xf32>
    %186 = vector.extract_strided_slice %93 {offsets = [0, 2], sizes = [8, 1], strides = [1, 1]} : vector<8x4xf32> to vector<8x1xf32>
    %187 = vector.extract_strided_slice %157 {offsets = [2, 0], sizes = [1, 16], strides = [1, 1]} : vector<4x16xf32> to vector<1x16xf32>
    %188 = vector.broadcast %186 : vector<8x1xf32> to vector<8x16xf32>
    %189 = vector.broadcast %187 : vector<1x16xf32> to vector<8x16xf32>
    %190 = arith.mulf %188, %189 : vector<8x16xf32>
    %191 = arith.addf %179, %190 : vector<8x16xf32>
    %192 = vector.extract_strided_slice %93 {offsets = [0, 3], sizes = [8, 1], strides = [1, 1]} : vector<8x4xf32> to vector<8x1xf32>
    %193 = vector.extract_strided_slice %140 {offsets = [3, 0], sizes = [1, 16], strides = [1, 1]} : vector<4x16xf32> to vector<1x16xf32>
    %194 = vector.broadcast %192 : vector<8x1xf32> to vector<8x16xf32>
    %195 = vector.broadcast %193 : vector<1x16xf32> to vector<8x16xf32>
    %196 = arith.mulf %194, %195 : vector<8x16xf32>
    %197 = arith.addf %185, %196 : vector<8x16xf32>
    %198 = vector.extract_strided_slice %93 {offsets = [0, 3], sizes = [8, 1], strides = [1, 1]} : vector<8x4xf32> to vector<8x1xf32>
    %199 = vector.extract_strided_slice %157 {offsets = [3, 0], sizes = [1, 16], strides = [1, 1]} : vector<4x16xf32> to vector<1x16xf32>
    %200 = vector.broadcast %198 : vector<8x1xf32> to vector<8x16xf32>
    %201 = vector.broadcast %199 : vector<1x16xf32> to vector<8x16xf32>
    %202 = arith.mulf %200, %201 : vector<8x16xf32>
    %203 = arith.addf %191, %202 : vector<8x16xf32>
    %c0_39 = arith.constant 0 : index
    %c0_40 = arith.constant 0 : index
    %c0_41 = arith.constant 0 : index
    %204 = vector.load %arg8[%c0_39, %c0_40, %c0_41] : memref<1x8x128xf32, #tpu.memory_space<vmem>>, vector<1x8x16xf32>
    %205 = vector.shape_cast %204 : vector<1x8x16xf32> to vector<8x16xf32>
    %206 = arith.addf %205, %197 : vector<8x16xf32>
    %c0_42 = arith.constant 0 : index
    %c0_43 = arith.constant 0 : index
    %c0_44 = arith.constant 0 : index
    %207 = vector.load %arg8[%c0_42, %c0_43, %c0_44] : memref<1x8x128xf32, #tpu.memory_space<vmem>>, vector<1x8x16xf32>
    %208 = vector.shape_cast %207 : vector<1x8x16xf32> to vector<8x16xf32>
    %209 = vector.shape_cast %206 : vector<8x16xf32> to vector<1x8x16xf32>
    tpu.vector_store %arg8[%c0_42, %c0_43, %c0_44], %209 {strides = array<i32>} : memref<1x8x128xf32, #tpu.memory_space<vmem>>, vector<1x8x16xf32>,
    %c0_45 = arith.constant 0 : index
    %c0_46 = arith.constant 0 : index
    %c112 = arith.constant 112 : index
    %210 = vector.load %arg8[%c0_45, %c0_46, %c112] : memref<1x8x128xf32, #tpu.memory_space<vmem>>, vector<1x8x16xf32>
    %211 = vector.shape_cast %210 : vector<1x8x16xf32> to vector<8x16xf32>
    %212 = arith.addf %211, %203 : vector<8x16xf32>
    %c0_47 = arith.constant 0 : index
    %c0_48 = arith.constant 0 : index
    %c112_49 = arith.constant 112 : index
    %213 = vector.load %arg8[%c0_47, %c0_48, %c112_49] : memref<1x8x128xf32, #tpu.memory_space<vmem>>, vector<1x8x16xf32>
    %214 = vector.shape_cast %213 : vector<1x8x16xf32> to vector<8x16xf32>
    %215 = vector.shape_cast %212 : vector<8x16xf32> to vector<1x8x16xf32>
    tpu.vector_store %arg8[%c0_47, %c0_48, %c112_49], %215 {strides = array<i32>} : memref<1x8x128xf32, #tpu.memory_space<vmem>>, vector<1x8x16xf32>,
    return
  }
  func.func @transform_0(%arg0: i32, %arg1: i32) -> (i32, i32, i32) {
    %c0_i32 = arith.constant 0 : i32
    %c0_i32_0 = arith.constant 0 : i32
    return %arg0, %c0_i32, %arg1 : i32, i32, i32
  }
  func.func @transform_1(%arg0: i32, %arg1: i32) -> (i32, i32, i32, i32) {
    %c1_i32 = arith.constant 1 : i32
    %0 = arith.muli %arg1, %c1_i32 : i32
    %c1_i32_0 = arith.constant 1 : i32
    %1 = arith.subi %0, %c1_i32_0 : i32
    %c0_i32 = arith.constant 0 : i32
    %2 = arith.maxsi %1, %c0_i32 : i32
    %c0_i32_1 = arith.constant 0 : i32
    %c0_i32_2 = arith.constant 0 : i32
    %c0_i32_3 = arith.constant 0 : i32
    return %arg0, %c0_i32_1, %2, %c0_i32_2 : i32, i32, i32, i32
  }
  func.func @transform_2(%arg0: i32, %arg1: i32) -> (i32, i32, i32, i32) {
    %c1_i32 = arith.constant 1 : i32
    %0 = arith.addi %arg1, %c1_i32 : i32
    %c1_i32_0 = arith.constant 1 : i32
    %1 = arith.muli %0, %c1_i32_0 : i32
    %c1_i32_1 = arith.constant 1 : i32
    %2 = arith.minsi %1, %c1_i32_1 : i32
    %c0_i32 = arith.constant 0 : i32
    %c0_i32_2 = arith.constant 0 : i32
    %c0_i32_3 = arith.constant 0 : i32
    return %arg0, %c0_i32, %2, %c0_i32_2 : i32, i32, i32, i32
  }
  func.func @transform_3(%arg0: i32, %arg1: i32) -> (i32, i32) {
    %c0_i32 = arith.constant 0 : i32
    %c0_i32_0 = arith.constant 0 : i32
    %c0_i32_1 = arith.constant 0 : i32
    return %c0_i32, %c0_i32_0 : i32, i32
  }
  func.func @transform_4(%arg0: i32, %arg1: i32) -> (i32, i32) {
    %c0_i32 = arith.constant 0 : i32
    %c0_i32_0 = arith.constant 0 : i32
    %c0_i32_1 = arith.constant 0 : i32
    return %c0_i32, %c0_i32_0 : i32, i32
  }
  func.func @transform_5(%arg0: i32, %arg1: i32) -> (i32, i32) {
    %c0_i32 = arith.constant 0 : i32
    %c0_i32_0 = arith.constant 0 : i32
    %c0_i32_1 = arith.constant 0 : i32
    return %c0_i32, %c0_i32_0 : i32, i32
  }
  func.func @transform_6(%arg0: i32, %arg1: i32) -> (i32, i32, i32) {
    %c0_i32 = arith.constant 0 : i32
    %c0_i32_0 = arith.constant 0 : i32
    return %arg0, %c0_i32, %arg1 : i32, i32, i32
  }
}

</mosaic_0001>

<llo_original>
// kernel: tpu_custom_call.1
$region0: #{tpu_custom_call.1}
  #allocation0 [shape = 'u32[]', space=smem, size = 0x4, offset = 0x4, fixed_abs, tag = 'smem constant byte address 0x4 - core index']
  #allocation1 [shape = 'u32[144,128]{1,0:T(1,128)}', space=vmem, size = 0x12000, scoped, tag = 'internal scratch']
  %s0 = inlined_call_operand.vmem [shape: f32[2,4,256], index: 0, kind: input, shape index: {}]
  %s1 = inlined_call_operand.hbm [shape: f32[2,4,16,16], index: 1, kind: input, shape index: {}]
  %s2 = inlined_call_operand.hbm [shape: f32[2,4,16,16], index: 2, kind: input, shape index: {}]
  %s3 = inlined_call_operand.vmem [shape: f32[4,9], index: 3, kind: input, shape index: {}]
  %s4 = inlined_call_operand.vmem [shape: f32[8,4], index: 4, kind: input, shape index: {}]
  %s5 = inlined_call_operand.vmem [shape: f32[8,1], index: 5, kind: input, shape index: {}]
  %s6 = inlined_call_operand.hbm [shape: f32[2,8,256], index: 6, kind: output, shape index: {}]
  %s7 = sld [smem:[#allocation0]]
  $region65: #{tpu_custom_call.1} parent=0
    _
  %s9 = ssub.s32 1, %s7
  %s10 = scalar_select 0, %s9, %s7
  $region1: #{tpu_custom_call.1} parent=0
    #allocation2 [shape = 'u8[32768]{0}', space=vmem, size = 0x8000, scoped, tag = 'input window, operand 1']
    #allocation3 [shape = 's32[2]{0}', space=sflag, size = 0x8, scoped, tag = 'scoped memory for tpu_custom_call.1']
    #allocation4 [shape = 's32[2]{0}', space=sflag, size = 0x8, scoped, tag = 'scoped memory for tpu_custom_call.1']
    #allocation5 [shape = 'u8[32768]{0}', space=vmem, size = 0x8000, scoped, tag = 'input window, operand 2']
    #allocation6 [shape = 's32[2]{0}', space=sflag, size = 0x8, scoped, tag = 'scoped memory for tpu_custom_call.1']
    #allocation7 [shape = 'u8[8192]{0}', space=vmem, size = 0x2000, scoped, tag = 'output window, operand 0']
    %11 = vsyncpa [#allocation3], 0
    %s12 = scalar_lea.sflag [#allocation3], 1
    %13 = vsyncpa %s12, 0
    %14 = vsyncpa [#allocation6], 0
    %s15 = scalar_lea.sflag [#allocation6], 1
    %16 = vsyncpa %s15, 0
    %17 = vsyncpa [#allocation4], 0
    %s18 = scalar_lea.sflag [#allocation4], 1
    %19 = vsyncpa %s18, 0
    loop: start=0, step=1, limit=6
    $region2: #{tpu_custom_call.1} parent=1 // loop_pre_header
      _
    $region3: #{tpu_custom_call.1} parent=1 // loop_header
      %s21 = sphi 0, %s25
      %p22 = scmp.ge.s32.totalorder %s21, 6
      %s28 = sphi 0, %s40
      %s29 = sphi 0, %s36
      %s30 = sphi 0, %s28
      %s31 = sphi 0, %s29
      %s32 = sphi 0, %s30
      %s33 = sphi 0, %s31
      %s45 = sphi 0, %s47
      %s48 = sphi 0, %s45
      %s49 = sphi 0, %s48
      %s65 = sphi 0, %s49
      %s79 = sphi 0, %s81
      %s82 = sphi 0, %s79
      %s83 = sphi 0, %s82
      %s99 = sphi 0, %s83
      %s113 = sphi 0, %s115
      %s116 = sphi 0, %s113
      %s117 = sphi 0, %s116
      %s133 = sphi 0, %s117
      %s137 = sphi 0, %s137
      %s139 = sphi 0, %s137
      %s140 = sphi 0, %s139
      %s154 = sphi 0, %s140
      %s158 = sphi 0, %s158
      %s160 = sphi 0, %s158
      %s161 = sphi 0, %s160
      %s175 = sphi 0, %s161
      %s179 = sphi 0, %s179
      %s181 = sphi 0, %s179
      %s182 = sphi 0, %s181
      %s196 = sphi 0, %s182
      %s204 = sphi 0, %s206
      %s207 = sphi 0, %s204
      %s208 = sphi 0, %s207
      %s224 = sphi 0, %s208
    $region4: #{tpu_custom_call.1} parent=1 // loop_header_branch
      %24 = sbr.rel (%p22) target = $region8
    $region5: #{tpu_custom_call.1} parent=1 // loop_body
      %s26 = ssub.s32 %s21, 1
      %s27 = ssub.s32 %s21, 2
      %s34 = sadd.s32 1, %s29
      %p35 = scmp.ge.s32.totalorder %s34, 2
      %s36 = scalar_select %p35, 0, %s34
      %s37 = sadd.s32 1, %s28
      %s38 = scalar_select %p35, %s37, %s28
      %p39 = scmp.ge.s32.totalorder %s38, 2
      %s40 = scalar_select %p39, 0, %s38
      %s41 = ssub.s32 %s28, %s40
      %s42 = ssub.s32 %s29, %s36
      %s43 = sor.u32 %s41, %s42
      %p44 = scmp.eq.s32.totalorder %s43, 0
      %s46 = sadd.s32 %s45, 1
      %s47 = scalar_select %p44, %s45, %s46
      %p50 = pneg %p44
      %p51 = scmp.eq.s32.totalorder %s21, 3
      %p52 = por %p50, %p51
      %p53 = scmp.ne.s32.totalorder %s45, %s48
      %p54 = scmp.eq.s32.totalorder %s21, 0
      %p55 = por %p53, %p54
      %p56 = scmp.ne.s32.totalorder %s45, %s48
      %p57 = scmp.eq.s32.totalorder %s26, 3
      %p58 = por %p56, %p57
      %p59 = scmp.ne.s32.totalorder %s48, %s49
      %p60 = scmp.eq.s32.totalorder %s26, 0
      %p61 = por %p59, %p60
      %p62 = scmp.ne.s32.totalorder %s48, %s49
      %p63 = scmp.eq.s32.totalorder %s27, 3
      %p64 = por %p62, %p63
      %p66 = scmp.ne.s32.totalorder %s49, %s65
      %p67 = scmp.eq.s32.totalorder %s27, 0
      %p68 = por %p66, %p67
      %s69 = ssub.s32 %s29, 1
      %p70 = scmp.gt.s32.totalorder %s69, 0
      %s71 = scalar_select %p70, %s69, 0
      %s72 = ssub.s32 %s36, 1
      %p73 = scmp.gt.s32.totalorder %s72, 0
      %s74 = scalar_select %p73, %s72, 0
      %s75 = ssub.s32 %s28, %s40
      %s76 = ssub.s32 %s71, %s74
      %s77 = sor.u32 %s75, %s76
      %p78 = scmp.eq.s32.totalorder %s77, 0
      %s80 = sadd.s32 %s79, 1
      %s81 = scalar_select %p78, %s79, %s80
      %p84 = pneg %p78
      %p85 = scmp.eq.s32.totalorder %s21, 3
      %p86 = por %p84, %p85
      %p87 = scmp.ne.s32.totalorder %s79, %s82
      %p88 = scmp.eq.s32.totalorder %s21, 0
      %p89 = por %p87, %p88
      %p90 = scmp.ne.s32.totalorder %s79, %s82
      %p91 = scmp.eq.s32.totalorder %s26, 3
      %p92 = por %p90, %p91
      %p93 = scmp.ne.s32.totalorder %s82, %s83
      %p94 = scmp.eq.s32.totalorder %s26, 0
      %p95 = por %p93, %p94
      %p96 = scmp.ne.s32.totalorder %s82, %s83
      %p97 = scmp.eq.s32.totalorder %s27, 3
      %p98 = por %p96, %p97
      %p100 = scmp.ne.s32.totalorder %s83, %s99
      %p101 = scmp.eq.s32.totalorder %s27, 0
      %p102 = por %p100, %p101
      %s103 = sadd.s32 %s29, 1
      %p104 = scmp.lt.s32.totalorder %s103, 1
      %s105 = scalar_select %p104, %s103, 1
      %s106 = sadd.s32 %s36, 1
      %p107 = scmp.lt.s32.totalorder %s106, 1
      %s108 = scalar_select %p107, %s106, 1
      %s109 = ssub.s32 %s28, %s40
      %s110 = ssub.s32 %s105, %s108
      %s111 = sor.u32 %s109, %s110
      %p112 = scmp.eq.s32.totalorder %s111, 0
      %s114 = sadd.s32 %s113, 1
      %s115 = scalar_select %p112, %s113, %s114
      %p118 = pneg %p112
      %p119 = scmp.eq.s32.totalorder %s21, 3
      %p120 = por %p118, %p119
      %p121 = scmp.ne.s32.totalorder %s113, %s116
      %p122 = scmp.eq.s32.totalorder %s21, 0
      %p123 = por %p121, %p122
      %p124 = scmp.ne.s32.totalorder %s113, %s116
      %p125 = scmp.eq.s32.totalorder %s26, 3
      %p126 = por %p124, %p125
      %p127 = scmp.ne.s32.totalorder %s116, %s117
      %p128 = scmp.eq.s32.totalorder %s26, 0
      %p129 = por %p127, %p128
      %p130 = scmp.ne.s32.totalorder %s116, %s117
      %p131 = scmp.eq.s32.totalorder %s27, 3
      %p132 = por %p130, %p131
      %p134 = scmp.ne.s32.totalorder %s117, %s133
      %p135 = scmp.eq.s32.totalorder %s27, 0
      %p136 = por %p134, %p135
      %s138 = sadd.s32 %s137, 1
      %p141 = scmp.eq.s32.totalorder %s21, 3
      %p142 = scmp.ne.s32.totalorder %s137, %s139
      %p143 = scmp.eq.s32.totalorder %s21, 0
      %p144 = por %p142, %p143
      %p145 = scmp.ne.s32.totalorder %s137, %s139
      %p146 = scmp.eq.s32.totalorder %s26, 3
      %p147 = por %p145, %p146
      %p148 = scmp.ne.s32.totalorder %s139, %s140
      %p149 = scmp.eq.s32.totalorder %s26, 0
      %p150 = por %p148, %p149
      %p151 = scmp.ne.s32.totalorder %s139, %s140
      %p152 = scmp.eq.s32.totalorder %s27, 3
      %p153 = por %p151, %p152
      %p155 = scmp.ne.s32.totalorder %s140, %s154
      %p156 = scmp.eq.s32.totalorder %s27, 0
      %p157 = por %p155, %p156
      %s159 = sadd.s32 %s158, 1
      %p162 = scmp.eq.s32.totalorder %s21, 3
      %p163 = scmp.ne.s32.totalorder %s158, %s160
      %p164 = scmp.eq.s32.totalorder %s21, 0
      %p165 = por %p163, %p164
      %p166 = scmp.ne.s32.totalorder %s158, %s160
      %p167 = scmp.eq.s32.totalorder %s26, 3
      %p168 = por %p166, %p167
      %p169 = scmp.ne.s32.totalorder %s160, %s161
      %p170 = scmp.eq.s32.totalorder %s26, 0
      %p171 = por %p169, %p170
      %p172 = scmp.ne.s32.totalorder %s160, %s161
      %p173 = scmp.eq.s32.totalorder %s27, 3
      %p174 = por %p172, %p173
      %p176 = scmp.ne.s32.totalorder %s161, %s175
      %p177 = scmp.eq.s32.totalorder %s27, 0
      %p178 = por %p176, %p177
      %s180 = sadd.s32 %s179, 1
      %p183 = scmp.eq.s32.totalorder %s21, 3
      %p184 = scmp.ne.s32.totalorder %s179, %s181
      %p185 = scmp.eq.s32.totalorder %s21, 0
      %p186 = por %p184, %p185
      %p187 = scmp.ne.s32.totalorder %s179, %s181
      %p188 = scmp.eq.s32.totalorder %s26, 3
      %p189 = por %p187, %p188
      %p190 = scmp.ne.s32.totalorder %s181, %s182
      %p191 = scmp.eq.s32.totalorder %s26, 0
      %p192 = por %p190, %p191
      %p193 = scmp.ne.s32.totalorder %s181, %s182
      %p194 = scmp.eq.s32.totalorder %s27, 3
      %p195 = por %p193, %p194
      %p197 = scmp.ne.s32.totalorder %s182, %s196
      %p198 = scmp.eq.s32.totalorder %s27, 0
      %p199 = por %p197, %p198
      %s200 = ssub.s32 %s28, %s40
      %s201 = ssub.s32 %s29, %s36
      %s202 = sor.u32 %s200, %s201
      %p203 = scmp.eq.s32.totalorder %s202, 0
      %s205 = sadd.s32 %s204, 1
      %s206 = scalar_select %p203, %s204, %s205
      %p209 = pneg %p203
      %p210 = scmp.eq.s32.totalorder %s21, 3
      %p211 = por %p209, %p210
      %p212 = scmp.ne.s32.totalorder %s204, %s207
      %p213 = scmp.eq.s32.totalorder %s21, 0
      %p214 = por %p212, %p213
      %p215 = scmp.ne.s32.totalorder %s204, %s207
      %p216 = scmp.eq.s32.totalorder %s26, 3
      %p217 = por %p215, %p216
      %p218 = scmp.ne.s32.totalorder %s207, %s208
      %p219 = scmp.eq.s32.totalorder %s26, 0
      %p220 = por %p218, %p219
      %p221 = scmp.ne.s32.totalorder %s207, %s208
      %p222 = scmp.eq.s32.totalorder %s27, 3
      %p223 = por %p221, %p222
      %p225 = scmp.ne.s32.totalorder %s208, %s224
      %p226 = scmp.eq.s32.totalorder %s27, 0
      %p227 = por %p225, %p226
      %p228 = scmp.le.s32.totalorder 1, %s21
      %p229 = scmp.lt.s32.totalorder %s21, 5
      %p230 = pnand %p228, %p229
      %p231 = pneg %p230
      // Predicated region
      $region9: #{tpu_custom_call.1} parent=5 // pred_check
        _
      $region10: #{tpu_custom_call.1} parent=5 // pred_check_branch
        %233 = sbr.rel (%p230) target = $region12
      $region11: #{tpu_custom_call.1} parent=5 // pred_region
        %s234 = ssub.s32 %s21, 1
        // Predicated region
        $region13: #{tpu_custom_call.1} parent=11 // pred_check
          %p235 = pneg %p150
        $region14: #{tpu_custom_call.1} parent=11 // pred_check_branch
          %237 = sbr.rel (%p235) target = $region16
        $region15: #{tpu_custom_call.1} parent=11 // pred_region
          _
        $region16: #{tpu_custom_call.1} parent=11 // pred_fallthru
          _
        // Predicated region
        $region17: #{tpu_custom_call.1} parent=11 // pred_check
          %p238 = pneg %p171
        $region18: #{tpu_custom_call.1} parent=11 // pred_check_branch
          %240 = sbr.rel (%p238) target = $region20
        $region19: #{tpu_custom_call.1} parent=11 // pred_region
          _
        $region20: #{tpu_custom_call.1} parent=11 // pred_fallthru
          _
        // Predicated region
        $region21: #{tpu_custom_call.1} parent=11 // pred_check
          %p241 = pneg %p192
        $region22: #{tpu_custom_call.1} parent=11 // pred_check_branch
          %243 = sbr.rel (%p241) target = $region24
        $region23: #{tpu_custom_call.1} parent=11 // pred_region
          _
        $region24: #{tpu_custom_call.1} parent=11 // pred_fallthru
          _
      $region12: #{tpu_custom_call.1} parent=5 // pred_fallthru
        _
      %p244 = scmp.lt.s32.totalorder %s21, 4
      // Predicated region
      $region25: #{tpu_custom_call.1} parent=5 // pred_check
        %p245 = pneg %p244
      $region26: #{tpu_custom_call.1} parent=5 // pred_check_branch
        %247 = sbr.rel (%p245) target = $region28
      $region27: #{tpu_custom_call.1} parent=5 // pred_region
        // Predicated region
        $region29: #{tpu_custom_call.1} parent=27 // pred_check
          %p248 = pneg %p55
        $region30: #{tpu_custom_call.1} parent=27 // pred_check_branch
          %250 = sbr.rel (%p248) target = $region32
        $region31: #{tpu_custom_call.1} parent=27 // pred_region
          %p251 = scmp.lt.s32.totalorder %s28, 1
          %s252 = scalar_select %p251, %s28, 1
          %p253 = scmp.lt.s32.totalorder %s29, 1
          %s254 = scalar_select %p253, %s29, 1
          %s255 = smul.addr %s252, 2
          %s256 = sadd.s32 %s254, %s255
          %s257 = smul.addr %s256, 4
          %s258 = scalar_lea.vmem %s0, %s257
        $region32: #{tpu_custom_call.1} parent=27 // pred_fallthru
          _
        // Predicated region
        $region33: #{tpu_custom_call.1} parent=27 // pred_check
          %p259 = pneg %p89
        $region34: #{tpu_custom_call.1} parent=27 // pred_check_branch
          %261 = sbr.rel (%p259) target = $region36
        $region35: #{tpu_custom_call.1} parent=27 // pred_region
          %s262 = sand.u32 %s79, 1
          %s263 = scalar_lea.sflag [#allocation3], %s262
          %s264 = sand.u32 %s79, 1
          %s265 = smul.addr %s264, 32
          %s266 = scalar_lea.vmem [#allocation2], %s265
          %s267 = ssub.s32 %s29, 1
          %p268 = scmp.gt.s32.totalorder %s267, 0
          %s269 = scalar_select %p268, %s267, 0
          %s271 = ssub.s32 512, 512
          %272 = vsyncadd %s263, %s271
          %s273 = smul.addr %s28, 8
          %s274 = sadd.s32 %s269, %s273
          %s275 = smul.addr %s274, 128
          %s276 = scalar_lea.hbm %s1, %s275
          %s277 = sshll.u32 %s266, 4
          %s278 = int_to_ptr.vmem [resolvable:$true] %s277
          %283 = dma.hbm_to_vmem [thread:$0]  %s276, 512, %s278, %s263, 256, 128, 8
        $region36: #{tpu_custom_call.1} parent=27 // pred_fallthru
          _
        // Predicated region
        $region37: #{tpu_custom_call.1} parent=27 // pred_check
          %p284 = pneg %p123
        $region38: #{tpu_custom_call.1} parent=27 // pred_check_branch
          %286 = sbr.rel (%p284) target = $region40
        $region39: #{tpu_custom_call.1} parent=27 // pred_region
          %s287 = sand.u32 %s113, 1
          %s288 = scalar_lea.sflag [#allocation6], %s287
          %s289 = sand.u32 %s113, 1
          %s290 = smul.addr %s289, 32
          %s291 = scalar_lea.vmem [#allocation5], %s290
          %s292 = sadd.s32 %s29, 1
          %p293 = scmp.lt.s32.totalorder %s292, 1
          %s294 = scalar_select %p293, %s292, 1
          %s296 = ssub.s32 512, 512
          %297 = vsyncadd %s288, %s296
          %s298 = smul.addr %s28, 8
          %s299 = sadd.s32 %s294, %s298
          %s300 = smul.addr %s299, 128
          %s301 = scalar_lea.hbm %s2, %s300
          %s302 = sshll.u32 %s291, 4
          %s303 = int_to_ptr.vmem [resolvable:$true] %s302
          %308 = dma.hbm_to_vmem [thread:$0]  %s301, 512, %s303, %s288, 256, 128, 8
        $region40: #{tpu_custom_call.1} parent=27 // pred_fallthru
          _
      $region28: #{tpu_custom_call.1} parent=5 // pred_fallthru
        _
      %p309 = scmp.le.s32.totalorder 1, %s21
      %p310 = scmp.lt.s32.totalorder %s21, 5
      %p311 = pnand %p309, %p310
      %p312 = pneg %p311
      // Predicated region
      $region41: #{tpu_custom_call.1} parent=5 // pred_check
        _
      $region42: #{tpu_custom_call.1} parent=5 // pred_check_branch
        %314 = sbr.rel (%p311) target = $region44
      $region43: #{tpu_custom_call.1} parent=5 // pred_region
        %s315 = ssub.s32 %s21, 1
        %s316 = sand.u32 %s82, 1
        %s317 = scalar_lea.sflag [#allocation3], %s316
        %s318 = sand.u32 %s82, 1
        %s319 = smul.addr %s318, 32
        %s320 = scalar_lea.vmem [#allocation2], %s319
        // Predicated region
        $region45: #{tpu_custom_call.1} parent=43 // pred_check
          %p321 = pneg %p95
        $region46: #{tpu_custom_call.1} parent=43 // pred_check_branch
          %323 = sbr.rel (%p321) target = $region48
        $region47: #{tpu_custom_call.1} parent=43 // pred_region
          %324 = dma.done %s317, 512
        $region48: #{tpu_custom_call.1} parent=43 // pred_fallthru
          _
        %s325 = sand.u32 %s116, 1
        %s326 = scalar_lea.sflag [#allocation6], %s325
        %s327 = sand.u32 %s116, 1
        %s328 = smul.addr %s327, 32
        %s329 = scalar_lea.vmem [#allocation5], %s328
        // Predicated region
        $region49: #{tpu_custom_call.1} parent=43 // pred_check
          %p330 = pneg %p129
        $region50: #{tpu_custom_call.1} parent=43 // pred_check_branch
          %332 = sbr.rel (%p330) target = $region52
        $region51: #{tpu_custom_call.1} parent=43 // pred_region
          %333 = dma.done %s326, 512
        $region52: #{tpu_custom_call.1} parent=43 // pred_fallthru
          _
        %p334 = scmp.lt.s32.totalorder %s30, 1
        %s335 = scalar_select %p334, %s30, 1
        %p336 = scmp.lt.s32.totalorder %s31, 1
        %s337 = scalar_select %p336, %s31, 1
        %s338 = smul.addr %s335, 2
        %s339 = sadd.s32 %s337, %s338
        %s340 = smul.addr %s339, 4
        %s341 = scalar_lea.vmem %s0, %s340
        %p342 = pneg %p61
        %p343 = pneg %p58
        %s344 = sand.u32 %s82, 1
        %s345 = scalar_lea.sflag [#allocation3], %s344
        %s346 = sand.u32 %s82, 1
        %s347 = smul.addr %s346, 32
        %s348 = scalar_lea.vmem [#allocation2], %s347
        %p349 = pneg %p95
        %p350 = pneg %p92
        %s351 = sand.u32 %s116, 1
        %s352 = scalar_lea.sflag [#allocation6], %s351
        %s353 = sand.u32 %s116, 1
        %s354 = smul.addr %s353, 32
        %s355 = scalar_lea.vmem [#allocation5], %s354
        %p356 = pneg %p129
        %p357 = pneg %p126
        %p358 = pneg %p150
        %p359 = pneg %p147
        %p360 = pneg %p171
        %p361 = pneg %p168
        %p362 = pneg %p192
        %p363 = pneg %p189
        %p364 = pneg %p220
        %p365 = pneg %p217
        %s366 = sand.u32 %s207, 1
        %s367 = scalar_lea.sflag [#allocation4], %s366
        %s368 = sand.u32 %s207, 1
        %s369 = smul.addr %s368, 8
        %s370 = scalar_lea.vmem [#allocation7], %s369
        %p371 = scmp.lt.s32.totalorder %s30, 1
        %s372 = scalar_select %p371, %s30, 1
        %p373 = scmp.lt.s32.totalorder %s31, 1
        %s374 = scalar_select %p373, %s31, 1
        %s375 = smul.addr %s372, 2
        %s376 = sadd.s32 %s374, %s375
        %s377 = smul.addr %s376, 4
        %s378 = scalar_lea.vmem %s0, %s377
        %s379 = ssub.s32 %s31, 1
        %p380 = scmp.gt.s32.totalorder %s379, 0
        %s381 = scalar_select %p380, %s379, 0
        %s382 = sadd.s32 %s31, 1
        %p383 = scmp.lt.s32.totalorder %s382, 1
        %s384 = scalar_select %p383, %s382, 1
        %v385 = vld [vmem:[%s378] sm:$0xf]
        %v386 = vld [vmem:[%s320 + $0x7] sm:$0x1]
        %v387 = vld [vmem:[%s320 + $0xf] sm:$0x1]
        %v388 = vld [vmem:[%s320 + $0x17] sm:$0x1]
        %v389 = vld [vmem:[%s320 + $0x1f] sm:$0x1]
        %v390 = vld [vmem:[%s329] sm:$0x1]
        %v391 = vld [vmem:[%s329 + $0x8] sm:$0x1]
        %v392 = vld [vmem:[%s329 + $0x10] sm:$0x1]
        %v393 = vld [vmem:[%s329 + $0x18] sm:$0x1]
        %p394 = scmp.gt.s32.totalorder %s31, 0
        %s395 = scalar_select %p394, 1, 0
        %v396 = vstv %s395
        %vm397 = vcmp.eq.s32.totalorder %v396, 1
        %v398 = vsel %vm397, %v386, 0.0
        %v399 = vsel %vm397, %v387, 0.0
        %v400 = vsel %vm397, %v388, 0.0
        %v401 = vsel %vm397, %v389, 0.0
        %p402 = scmp.lt.s32.totalorder %s31, 1
        %s403 = scalar_select %p402, 1, 0
        %v404 = vstv %s403
        %vm405 = vcmp.eq.s32.totalorder %v404, 1
        %v406 = vsel %vm405, %v390, 0.0
        %v407 = vsel %vm405, %v391, 0.0
        %v408 = vsel %vm405, %v392, 0.0
        %v409 = vsel %vm405, %v393, 0.0
        %v410 = vld [vmem:[%s3] sm:$0xf]
        %v411 = vlaneseq
        %v412 = vand.u32 %v411, 127
        %vm413 = vcmp.lt.s32.totalorder %v412, 0
        %v414 = vsub.s32 0, %v412
        %v415 = vsel %vm413, %v414, %v412
        %v416 = vshrl.u32 %v415, 4
        %v417 = vand.u32 %v415, 15
        %v418 = vsub.s32 0, %v417
        %v419 = vsel %vm413, %v418, %v417
        %vm420 = vcmp.ne.s32.totalorder %v419, 0
        %vm421 = vcmp.lt.s32.totalorder %v419, 0
        %vm422 = vmand %vm421, %vm420
        %v423 = vadd.s32 %v419, 16
        %v424 = vsel %vm422, %v423, %v419
        %vm425 = vcmp.ge.s32.totalorder %v412, 16
        %426 = vrot.lane.b32.xlu0 %v385, 16
        %v427 = vpop.permute.xlu0 %426
        %v428 = vsel %vm425, 1, 0
        %vm429 = vcmp.eq.s32.totalorder %v428, 1
        %v430 = vsel %vm429, %v427, 0.0
        %vm431 = vcmp.lt.s32.totalorder %v412, 112
        %432 = vrot.lane.b32.xlu0 %v385, 112
        %v433 = vpop.permute.xlu0 %432
        %v434 = vsel %vm431, 1, 0
        %vm435 = vcmp.eq.s32.totalorder %v434, 1
        %v436 = vsel %vm435, %v433, 0.0
        %438 = vset.pattern.permute.xlu0 0
        %439 = vperm.xlu0 %438, %v410
        %v440 = vpop.permute.xlu0 %439
        %v442 = vmul.f32 %v440, %v430
        %443 = vset.pattern.permute.xlu0 3
        %444 = vperm.xlu0 %443, %v410
        %v445 = vpop.permute.xlu0 %444
        %v447 = vmul.f32 %v445, %v385
        %v448 = vadd.f32 %v442, %v447
        %449 = vset.pattern.permute.xlu0 6
        %450 = vperm.xlu0 %449, %v410
        %v451 = vpop.permute.xlu0 %450
        %v453 = vmul.f32 %v451, %v436
        %v454 = vadd.f32 %v448, %v453
        %455 = vset.pattern.permute.xlu0 1
        %456 = vperm.xlu0 %455, %v410
        %v457 = vpop.permute.xlu0 %456
        %v459 = vmul.f32 %v457, %v430
        %460 = vset.pattern.permute.xlu0 4
        %461 = vperm.xlu0 %460, %v410
        %v462 = vpop.permute.xlu0 %461
        %v464 = vmul.f32 %v462, %v385
        %v465 = vadd.f32 %v459, %v464
        %466 = vset.pattern.permute.xlu0 7
        %467 = vperm.xlu0 %466, %v410
        %v468 = vpop.permute.xlu0 %467
        %v470 = vmul.f32 %v468, %v436
        %v471 = vadd.f32 %v465, %v470
        %472 = vset.pattern.permute.xlu0 2
        %473 = vperm.xlu0 %472, %v410
        %v474 = vpop.permute.xlu0 %473
        %v476 = vmul.f32 %v474, %v430
        %477 = vset.pattern.permute.xlu0 5
        %478 = vperm.xlu0 %477, %v410
        %v479 = vpop.permute.xlu0 %478
        %v481 = vmul.f32 %v479, %v385
        %v482 = vadd.f32 %v476, %v481
        %483 = vset.pattern.permute.xlu0 8
        %484 = vperm.xlu0 %483, %v410
        %v485 = vpop.permute.xlu0 %484
        %v487 = vmul.f32 %v485, %v436
        %v488 = vadd.f32 %v482, %v487
        %vm489 = vcmp.ne.s32.totalorder %v424, 0
        %490 = vrot.lane.b32.xlu0 %v454, 1
        %v491 = vpop.permute.xlu0 %490
        %v492 = vsel %vm489, 1, 0
        %vm493 = vcmp.eq.s32.totalorder %v492, 1
        %v494 = vsel %vm493, %v491, 0.0
        %v495 = vadd.f32 %v471, %v494
        %vm496 = vcmp.ne.s32.totalorder %v424, 15
        %497 = vrot.lane.b32.xlu0 %v488, 127
        %v498 = vpop.permute.xlu0 %497
        %v499 = vsel %vm496, 1, 0
        %vm500 = vcmp.eq.s32.totalorder %v499, 1
        %v501 = vsel %vm500, %v498, 0.0
        %v502 = vadd.f32 %v495, %v501
        %v503 = vld [vmem:[%s4] sm:$0xff]
        %505 = vset.pattern.permute.xlu0 0
        %506 = vperm.xlu0 %505, %v503
        %v507 = vpop.permute.xlu0 %506
        %v509 = vlaneseq
        %v510 = vshrl.u32 %v509, 7
        %v511 = vsub.s32 0, %v510
        %v512 = vrot.slane %v502, %v511
        %v513 = vmul.f32 %v507, %v512
        %514 = vset.pattern.permute.xlu0 1
        %515 = vperm.xlu0 %514, %v503
        %v516 = vpop.permute.xlu0 %515
        %v518 = vlaneseq
        %v519 = vshrl.u32 %v518, 7
        %v520 = vsub.s32 1, %v519
        %v521 = vrot.slane %v502, %v520
        %v522 = vmul.f32 %v516, %v521
        %v523 = vadd.f32 %v513, %v522
        %524 = vset.pattern.permute.xlu0 2
        %525 = vperm.xlu0 %524, %v503
        %v526 = vpop.permute.xlu0 %525
        %v528 = vlaneseq
        %v529 = vshrl.u32 %v528, 7
        %v530 = vsub.s32 2, %v529
        %v531 = vrot.slane %v502, %v530
        %v532 = vmul.f32 %v526, %v531
        %v533 = vadd.f32 %v523, %v532
        %534 = vset.pattern.permute.xlu0 3
        %535 = vperm.xlu0 %534, %v503
        %v536 = vpop.permute.xlu0 %535
        %v538 = vlaneseq
        %v539 = vshrl.u32 %v538, 7
        %v540 = vsub.s32 3, %v539
        %v541 = vrot.slane %v502, %v540
        %v542 = vmul.f32 %v536, %v541
        %v543 = vadd.f32 %v533, %v542
        %v544 = vld [vmem:[%s5] sm:$0xff]
        %546 = vset.pattern.permute.xlu0 0
        %547 = vperm.xlu0 %546, %v544
        %v548 = vpop.permute.xlu0 %547
        %v550 = vadd.f32 %v543, %v548
        %551 = vst [vmem:[%s370] sm:$0xff] %v550
        %v552 = vld [vmem:[%s3] sm:$0xf]
        %v557 = vrot.slane %v399, 7
        %vm558 = vcmask 1041409
        %v559 = vsel %vm558, %v557, %v398
        %v560 = vrot.slane %v400, 6
        %vm561 = vcmask 1042434
        %v562 = vsel %vm561, %v560, %v559
        %v563 = vrot.slane %v401, 5
        %vm564 = vcmask 1043459
        %v565 = vsel %vm564, %v563, %v562
        %566 = vrot.lane.b32.xlu0 %v565, 1
        %v567 = vpop.permute.xlu0 %566
        %vm569 = vcmask 7168
        %v570 = vsel %vm569, 0.0, %v567
        %572 = vset.pattern.permute.xlu0 0
        %573 = vperm.xlu0 %572, %v552
        %v574 = vpop.permute.xlu0 %573
        %v576 = vmul.f32 %v574, %v570
        %577 = vset.pattern.permute.xlu0 1
        %578 = vperm.xlu0 %577, %v552
        %v579 = vpop.permute.xlu0 %578
        %v582 = vmul.f32 %v579, %v565
        %v583 = vadd.f32 %v576, %v582
        %584 = vrot.lane.b32.xlu0 %v565, 127
        %v585 = vpop.permute.xlu0 %584
        %vm587 = vcmask 121856
        %v588 = vsel %vm587, %v585, 0.0
        %589 = vset.pattern.permute.xlu0 2
        %590 = vperm.xlu0 %589, %v552
        %v591 = vpop.permute.xlu0 %590
        %v593 = vmul.f32 %v591, %v588
        %v594 = vadd.f32 %v583, %v593
        %v599 = vrot.slane %v407, 7
        %v600 = vsel %vm558, %v599, %v406
        %v601 = vrot.slane %v408, 6
        %v602 = vsel %vm561, %v601, %v600
        %v603 = vrot.slane %v409, 5
        %v604 = vsel %vm564, %v603, %v602
        %605 = vrot.lane.b32.xlu0 %v604, 1
        %v606 = vpop.permute.xlu0 %605
        %v608 = vsel %vm569, 0.0, %v606
        %609 = vset.pattern.permute.xlu0 6
        %610 = vperm.xlu0 %609, %v552
        %v611 = vpop.permute.xlu0 %610
        %v613 = vmul.f32 %v611, %v608
        %614 = vset.pattern.permute.xlu0 7
        %615 = vperm.xlu0 %614, %v552
        %v616 = vpop.permute.xlu0 %615
        %v619 = vmul.f32 %v616, %v604
        %v620 = vadd.f32 %v613, %v619
        %621 = vrot.lane.b32.xlu0 %v604, 127
        %v622 = vpop.permute.xlu0 %621
        %v624 = vsel %vm587, %v622, 0.0
        %625 = vset.pattern.permute.xlu0 8
        %626 = vperm.xlu0 %625, %v552
        %v627 = vpop.permute.xlu0 %626
        %v629 = vmul.f32 %v627, %v624
        %v630 = vadd.f32 %v620, %v629
        %v631 = vlaneseq
        %v632 = vshrl.u32 %v631, 7
        %v633 = vsub.s32 0, %v632
        %v634 = vrot.slane %v594, %v633
        %v635 = vmul.f32 %v507, %v634
        %v636 = vlaneseq
        %v637 = vshrl.u32 %v636, 7
        %v638 = vsub.s32 0, %v637
        %v639 = vrot.slane %v630, %v638
        %v640 = vmul.f32 %v507, %v639
        %v641 = vlaneseq
        %v642 = vshrl.u32 %v641, 7
        %v643 = vsub.s32 1, %v642
        %v644 = vrot.slane %v594, %v643
        %v645 = vmul.f32 %v516, %v644
        %v646 = vadd.f32 %v635, %v645
        %v647 = vlaneseq
        %v648 = vshrl.u32 %v647, 7
        %v649 = vsub.s32 1, %v648
        %v650 = vrot.slane %v630, %v649
        %v651 = vmul.f32 %v516, %v650
        %v652 = vadd.f32 %v640, %v651
        %v653 = vlaneseq
        %v654 = vshrl.u32 %v653, 7
        %v655 = vsub.s32 2, %v654
        %v656 = vrot.slane %v594, %v655
        %v657 = vmul.f32 %v526, %v656
        %v658 = vadd.f32 %v646, %v657
        %v659 = vlaneseq
        %v660 = vshrl.u32 %v659, 7
        %v661 = vsub.s32 2, %v660
        %v662 = vrot.slane %v630, %v661
        %v663 = vmul.f32 %v526, %v662
        %v664 = vadd.f32 %v652, %v663
        %v665 = vlaneseq
        %v666 = vshrl.u32 %v665, 7
        %v667 = vsub.s32 3, %v666
        %v668 = vrot.slane %v594, %v667
        %v669 = vmul.f32 %v536, %v668
        %v670 = vadd.f32 %v658, %v669
        %v671 = vlaneseq
        %v672 = vshrl.u32 %v671, 7
        %v673 = vsub.s32 3, %v672
        %v674 = vrot.slane %v630, %v673
        %v675 = vmul.f32 %v536, %v674
        %v676 = vadd.f32 %v664, %v675
        %v677 = vld [vmem:[%s370] sm:$0xff]
        %v678 = vadd.f32 %v677, %v670
        %vm679 = vcmask 130048
        %680 = vst.msk [vmem:[%s370] sm:$0xff] %vm679, %v678
        %v681 = vld [vmem:[%s370] sm:$0xff]
        %683 = vrot.lane.b32.xlu0 %v676, 112
        %v684 = vpop.permute.xlu0 %683
        %v686 = vadd.f32 %v681, %v684
        %vm687 = vcmask 1048448
        %688 = vst.msk [vmem:[%s370] sm:$0xff] %vm687, %v686
        %s689 = sand.u32 %s207, 1
        %s690 = scalar_lea.sflag [#allocation4], %s689
        %s691 = sand.u32 %s207, 1
        %s692 = smul.addr %s691, 8
        %s693 = scalar_lea.vmem [#allocation7], %s692
        // Predicated region
        $region53: #{tpu_custom_call.1} parent=43 // pred_check
          %p694 = pneg %p217
        $region54: #{tpu_custom_call.1} parent=43 // pred_check_branch
          %696 = sbr.rel (%p694) target = $region56
        $region55: #{tpu_custom_call.1} parent=43 // pred_region
          %s698 = ssub.s32 128, 128
          %699 = vsyncadd %s690, %s698
          %s700 = smul.addr %s30, 2
          %s701 = sadd.s32 %s31, %s700
          %s702 = smul.addr %s701, 128
          %s703 = scalar_lea.hbm %s6, %s702
          %s705 = sshll.u32 %s693, 4
          %s706 = int_to_ptr.vmem [resolvable:$true] %s705
          %708 = dma.vmem_to_hbm [thread:$0]  %s706, 128, %s703, %s690
        $region56: #{tpu_custom_call.1} parent=43 // pred_fallthru
          _
      $region44: #{tpu_custom_call.1} parent=5 // pred_fallthru
        _
      %p709 = scmp.le.s32.totalorder 2, %s21
      // Predicated region
      $region57: #{tpu_custom_call.1} parent=5 // pred_check
        %p710 = pneg %p709
      $region58: #{tpu_custom_call.1} parent=5 // pred_check_branch
        %712 = sbr.rel (%p710) target = $region60
      $region59: #{tpu_custom_call.1} parent=5 // pred_region
        %s713 = ssub.s32 %s21, 2
        // Predicated region
        $region61: #{tpu_custom_call.1} parent=59 // pred_check
          %p714 = pneg %p223
        $region62: #{tpu_custom_call.1} parent=59 // pred_check_branch
          %716 = sbr.rel (%p714) target = $region64
        $region63: #{tpu_custom_call.1} parent=59 // pred_region
          %s717 = sand.u32 %s208, 1
          %s718 = scalar_lea.sflag [#allocation4], %s717
          %s719 = sand.u32 %s208, 1
          %s720 = smul.addr %s719, 8
          %s721 = scalar_lea.vmem [#allocation7], %s720
          %722 = dma.done %s718, 128
        $region64: #{tpu_custom_call.1} parent=59 // pred_fallthru
          _
      $region60: #{tpu_custom_call.1} parent=5 // pred_fallthru
        _
    $region6: #{tpu_custom_call.1} parent=1 // loop_footer
      %s25 = sadd.s32 1, %s21
    $region7: #{tpu_custom_call.1} parent=1 // loop_footer_branch
      %20 = sbr.rel target = $region3
    $region8: #{tpu_custom_call.1} parent=1 // loop_exit
      _
    %723 = vsyncpa [#allocation3], 1
    %s724 = scalar_lea.sflag [#allocation3], 1
    %725 = vsyncpa %s724, 1
    %726 = vsyncpa [#allocation6], 1
    %s727 = scalar_lea.sflag [#allocation6], 1
    %728 = vsyncpa %s727, 1
    %729 = vsyncpa [#allocation4], 1
    %s730 = scalar_lea.sflag [#allocation4], 1
    %731 = vsyncpa %s730, 1

</llo_original>
